<compile_context>
chip_gen: v7x
topology: tpu7x:2x2x1
jax: 0.10.0
libtpu: 0.0.40
codegen_flags: <defaults>
</compile_context>

<pallas_src>
import jax
import jax.numpy as jnp
from jax.experimental import pallas as pl
from jax.experimental.pallas import tpu as pltpu

# ----------------------- problem sizes (small, deterministic) ----------------
N = 2          # batch
C_IN = 4       # in channels
C_OUT = 8      # out channels
L = 16         # input length
K = 3          # conv kernel size
L_OUT = L - K + 1  # 14


def fused_conv_add_kernel(w_ref, p_ref, o_ref):
    # w_ref : (C_OUT, K*C_IN + 1)      VMEM  (folded w1+w2, im2col-flat, bias col)
    # p_ref : (K*C_IN + 1, N*L_OUT)    VMEM  (im2col patches + ones row)
    # o_ref : (C_OUT, N*L_OUT)         VMEM  (lane-dense slab, single store)
    o_ref[...] = jnp.dot(
        w_ref[...], p_ref[...],
        preferred_element_type=jnp.float32).astype(o_ref.dtype)


def add_model(x, w1, b1, w2, b2):
    # --- algebraic fold of the two conv branches (exact up to fp32 reassoc) ---
    w = w1 + w2                                            # (C_OUT, C_IN, K)
    b = (b1 + b2).reshape(C_OUT, 1)                        # (C_OUT, 1)

    # Flatten weights for im2col, row index j = k*C_IN + i, then append the
    # folded bias as the last column (bias folded into the matmul).
    w_flat = jnp.transpose(w, (0, 2, 1)).reshape(C_OUT, K * C_IN)
    w_aug = jnp.concatenate([w_flat, b], axis=1)           # (C_OUT, K*C_IN+1)

    # Build im2col patches in the wrapper (one-time XLA relayout, kept out of
    # the kernel): patches[k*C_IN + i, n*L_OUT + l] = x[n, i, l + k].
    taps = [x[:, :, k:k + L_OUT] for k in range(K)]        # each (N, C_IN, L_OUT)
    patches = jnp.concatenate(taps, axis=1)                # (N, K*C_IN, L_OUT)
    patches = jnp.transpose(patches, (1, 0, 2)).reshape(K * C_IN, N * L_OUT)
    ones = jnp.ones((1, N * L_OUT), patches.dtype)
    patches_aug = jnp.concatenate([patches, ones], axis=0)  # (K*C_IN+1, N*L_OUT)

    # Single-invocation pallas_call: no grid, full arrays resident in VMEM.
    out2d = pl.pallas_call(
        fused_conv_add_kernel,
        out_shape=jax.ShapeDtypeStruct((C_OUT, N * L_OUT), jnp.float32),
        in_specs=[
            pl.BlockSpec(memory_space=pltpu.MemorySpace.VMEM),
            pl.BlockSpec(memory_space=pltpu.MemorySpace.VMEM),
        ],
        out_specs=pl.BlockSpec(memory_space=pltpu.MemorySpace.VMEM),
    )(w_aug, patches_aug)

    # Lane-dense kernel output -> PyTorch layout (N, C_OUT, L_OUT) in the wrapper.
    return jnp.transpose(out2d.reshape(C_OUT, N, L_OUT), (1, 0, 2))


def reference(x, w1, b1, w2, b2):
    # Pure-JAX reference (PyTorch Conv1d semantics, stride=1, no padding).
    def conv1d(x, w, b):
        out = jax.lax.conv_general_dilated(
            x, w, window_strides=(1,), padding="VALID",
            dimension_numbers=("NCH", "OIH", "NCH"))
        return out + b.reshape(1, -1, 1)
    return conv1d(x, w1, b1) + conv1d(x, w2, b2)


if __name__ == "__main__":
    key = jax.random.PRNGKey(0)
    kx, k1, k2, k3, k4 = jax.random.split(key, 5)

    x = jax.random.normal(kx, (N, C_IN, L), jnp.float32)
    # Deterministic parameter init (uniform, roughly PyTorch-scale).
    bound = 1.0 / (C_IN * K) ** 0.5
    w1 = jax.random.uniform(k1, (C_OUT, C_IN, K), jnp.float32, -bound, bound)
    b1 = jax.random.uniform(k2, (C_OUT,), jnp.float32, -bound, bound)
    w2 = jax.random.uniform(k3, (C_OUT, C_IN, K), jnp.float32, -bound, bound)
    b2 = jax.random.uniform(k4, (C_OUT,), jnp.float32, -bound, bound)

    out = add_model(x, w1, b1, w2, b2)
    out = jax.block_until_ready(out)

    ref = reference(x, w1, b1, w2, b2)
    assert out.shape == (N, C_OUT, L_OUT), out.shape
    assert jnp.allclose(out, ref, atol=1e-5, rtol=1e-5), \
        float(jnp.max(jnp.abs(out - ref)))

    print("KERNEL_OK")
</pallas_src>

<mosaic_0001>
module attributes {stable_mosaic.version = 11 : i64} {
  func.func @fused_conv_add_kernel(%arg0: memref<8x13xf32, #tpu.memory_space<vmem>>, %arg1: memref<13x28xf32, #tpu.memory_space<vmem>>, %arg2: memref<8x28xf32, #tpu.memory_space<vmem>>) attributes {dimension_semantics = [], scalar_prefetch = 0 : i64, scratch_operands = 0 : i64, tpu.core_type = #tpu.core_type<tc>} {
    %c0 = arith.constant 0 : index
    %c0_0 = arith.constant 0 : index
    %0 = vector.load %arg0[%c0, %c0_0] : memref<8x13xf32, #tpu.memory_space<vmem>>, vector<8x13xf32>
    %c0_1 = arith.constant 0 : index
    %c0_2 = arith.constant 0 : index
    %1 = vector.load %arg1[%c0_1, %c0_2] : memref<13x28xf32, #tpu.memory_space<vmem>>, vector<13x28xf32>
    %cst = arith.constant dense<0.000000e+00> : vector<8x28xf32>
    %2 = tpu.matmul %0, %1, %cst {dimension_numbers = #tpu.dot_dimension_numbers<[1], [0], [0], [1], [0, 0, 1, 1], [], []>} : vector<8x13xf32>, vector<13x28xf32>, vector<8x28xf32> -> vector<8x28xf32>
    %c0_3 = arith.constant 0 : index
    %c0_4 = arith.constant 0 : index
    %3 = vector.load %arg2[%c0_3, %c0_4] : memref<8x28xf32, #tpu.memory_space<vmem>>, vector<8x28xf32>
    tpu.vector_store %arg2[%c0_3, %c0_4], %2 {strides = array<i32>} : memref<8x28xf32, #tpu.memory_space<vmem>>, vector<8x28xf32>,
    return
  }
}

</mosaic_0001>

<llo_original>
// kernel: tpu_custom_call.1
$region0: #{tpu_custom_call.1}
  #allocation0 [shape = 'u32[]', space=smem, size = 0x4, offset = 0x4, fixed_abs, tag = 'smem constant byte address 0x4 - core index']
  #allocation1 [shape = 'u32[144,128]{1,0:T(1,128)}', space=vmem, size = 0x12000, scoped, tag = 'internal scratch']
  %s0 = inlined_call_operand.hbm [shape: f32[8,13], index: 0, kind: input, shape index: {}]
  %s1 = inlined_call_operand.hbm [shape: f32[13,28], index: 1, kind: input, shape index: {}]
  %s2 = inlined_call_operand.hbm [shape: f32[8,28], index: 2, kind: output, shape index: {}]
  %s3 = sld [smem:[#allocation0]]
  $region26: #{tpu_custom_call.1} parent=0
    _
  %s5 = ssub.s32 1, %s3
  %s6 = scalar_select 0, %s5, %s3
  $region1: #{tpu_custom_call.1} parent=0
    #allocation2 [shape = 'u8[4096]{0}', space=vmem, size = 0x1000, scoped, tag = 'input window, operand 0, single buffered']
    #allocation3 [shape = 's32[1]{0}', space=sflag, size = 0x4, scoped, tag = 'scoped memory for tpu_custom_call.1']
    #allocation4 [shape = 's32[1]{0}', space=sflag, size = 0x4, scoped, tag = 'scoped memory for tpu_custom_call.1']
    #allocation5 [shape = 'u8[8192]{0}', space=vmem, size = 0x2000, scoped, tag = 'input window, operand 1, single buffered']
    #allocation6 [shape = 's32[1]{0}', space=sflag, size = 0x4, scoped, tag = 'scoped memory for tpu_custom_call.1']
    #allocation7 [shape = 'u8[4096]{0}', space=vmem, size = 0x1000, scoped, tag = 'output window, operand 0, single buffered']
    %7 = vsyncpa [#allocation3], 0
    %8 = vsyncpa [#allocation6], 0
    %9 = vsyncpa [#allocation4], 0
    // Predicated region
    $region2: #{tpu_custom_call.1} parent=1 // pred_check
      _
    $region3: #{tpu_custom_call.1} parent=1 // pred_check_branch
      %11 = sbr.rel (0) target = $region5
    $region4: #{tpu_custom_call.1} parent=1 // pred_region
      %s13 = ssub.s32 128, 128
      %14 = vsyncadd [#allocation3], %s13
      %s16 = sshll.u32 [#allocation2], 4
      %s17 = int_to_ptr.vmem [resolvable:$true] %s16
      %19 = dma.hbm_to_vmem [thread:$0]  %s0, 128, %s17, [#allocation3]
    $region5: #{tpu_custom_call.1} parent=1 // pred_fallthru
      _
    // Predicated region
    $region6: #{tpu_custom_call.1} parent=1 // pred_check
      _
    $region7: #{tpu_custom_call.1} parent=1 // pred_check_branch
      %21 = sbr.rel (0) target = $region9
    $region8: #{tpu_custom_call.1} parent=1 // pred_region
      %s23 = ssub.s32 256, 256
      %24 = vsyncadd [#allocation6], %s23
      %s25 = sshll.u32 [#allocation5], 4
      %s26 = int_to_ptr.vmem [resolvable:$true] %s25
      %31 = dma.hbm_to_vmem [thread:$0]  %s1, 256, %s26, [#allocation6], 128, 128, 8
    $region9: #{tpu_custom_call.1} parent=1 // pred_fallthru
      _
    // Predicated region
    $region10: #{tpu_custom_call.1} parent=1 // pred_check
      _
    $region11: #{tpu_custom_call.1} parent=1 // pred_check_branch
      %33 = sbr.rel (0) target = $region13
    $region12: #{tpu_custom_call.1} parent=1 // pred_region
      %34 = dma.done [#allocation3], 128
    $region13: #{tpu_custom_call.1} parent=1 // pred_fallthru
      _
    // Predicated region
    $region14: #{tpu_custom_call.1} parent=1 // pred_check
      _
    $region15: #{tpu_custom_call.1} parent=1 // pred_check_branch
      %36 = sbr.rel (0) target = $region17
    $region16: #{tpu_custom_call.1} parent=1 // pred_region
      %37 = dma.done [#allocation6], 256
    $region17: #{tpu_custom_call.1} parent=1 // pred_fallthru
      _
    %v38 = vld [vmem:[#allocation2] sm:$0xff]
    %v39 = vld [vmem:[#allocation5] sm:$0xff]
    %v40 = vld [vmem:[#allocation5 + $0x8] sm:$0x1f]
    %vm41 = vcmask 105472
    %v43 = vsel %vm41, %v38, 0
    %vm45 = vcmask 1044480
    %v47 = vsel %vm45, %v40, 0
    %49 = vmatprep.subr.mxu0 0.0
    %50 = vmatpush1.msra.mxu0 %v39
    %51 = vmatprep.subr.mxu0 0.0
    %52 = vmatpush1.msra.mxu0 %v47
    %53 = vmatprep.subr.mxu0 0.0
    %54 = vmatpush1.msra.mxu0 0.0
    %55 = vmatprep.subr.mxu0 0.0
    %56 = vmatpush1.msra.mxu0 0.0
    %57 = vmatprep.subr.mxu0 0.0
    %58 = vmatpush1.msra.mxu0 0.0
    %59 = vmatprep.subr.mxu0 0.0
    %60 = vmatpush1.msra.mxu0 0.0
    %61 = vmatprep.subr.mxu0 0.0
    %62 = vmatpush1.msra.mxu0 0.0
    %63 = vmatprep.subr.mxu0 0.0
    %64 = vmatpush1.msra.mxu0 0.0
    %65 = vmatprep.subr.mxu0 0.0
    %66 = vmatpush1.msra.mxu0 0.0
    %67 = vmatprep.subr.mxu0 0.0
    %68 = vmatpush1.msra.mxu0 0.0
    %69 = vmatprep.subr.mxu0 0.0
    %70 = vmatpush1.msra.mxu0 0.0
    %71 = vmatprep.subr.mxu0 0.0
    %72 = vmatpush1.msra.mxu0 0.0
    %73 = vmatprep.subr.mxu0 0.0
    %74 = vmatpush1.msra.mxu0 0.0
    %75 = vmatprep.subr.mxu0 0.0
    %76 = vmatpush1.msra.mxu0 0.0
    %77 = vmatprep.subr.mxu0 0.0
    %78 = vmatpush1.msra.mxu0 0.0
    %79 = vmatprep.subr.mxu0 0.0
    %80 = vmatpush1.msra.mxu0 0.0
    %81 = vmatprep.subr.mxu0 0.0
    %82 = vmatpush1.msra.mxu0 0.0
    %83 = vmatprep.subr.mxu0 0.0
    %84 = vmatpush1.msra.mxu0 0.0
    %85 = vmatprep.subr.mxu0 0.0
    %86 = vmatpush1.msra.mxu0 0.0
    %87 = vmatprep.subr.mxu0 0.0
    %88 = vmatpush1.msra.mxu0 0.0
    %89 = vmatprep.subr.mxu0 0.0
    %90 = vmatpush1.msra.mxu0 0.0
    %91 = vmatprep.subr.mxu0 0.0
    %92 = vmatpush1.msra.mxu0 0.0
    %93 = vmatprep.subr.mxu0 0.0
    %94 = vmatpush1.msra.mxu0 0.0
    %95 = vmatprep.subr.mxu0 0.0
    %96 = vmatpush1.msra.mxu0 0.0
    %97 = vmatprep.subr.mxu0 0.0
    %98 = vmatpush1.msra.mxu0 0.0
    %99 = vmatprep.subr.mxu0 0.0
    %100 = vmatpush1.msra.mxu0 0.0
    %101 = vmatprep.subr.mxu0 0.0
    %102 = vmatpush1.msra.mxu0 0.0
    %103 = vmatprep.subr.mxu0 0.0
    %104 = vmatpush1.msra.mxu0 0.0
    %105 = vmatprep.subr.mxu0 0.0
    %106 = vmatpush1.msra.mxu0 0.0
    %107 = vmatprep.subr.mxu0 0.0
    %108 = vmatpush1.msra.mxu0 0.0
    %109 = vmatprep.subr.mxu0 0.0
    %110 = vmatpush1.msra.mxu0 0.0
    %111 = vmatprep.subr.mxu0 0.0
    %112 = vmatpush1.msra.mxu0 0.0
    %113 = vmatprep.mubr.f32.mxu0 0.0
    %114 = vmatmul.mubr.f32.gmra.mrb[0].mxu0 %v43
    %v115 = vpop.f32.mrb[0].mxu0
    %v116 = vadd.f32 0.0, %v115
    %v117 = vpop.f32.mrb[0].mxu0
    %118 = vdwg.mxu0
    %vm119 = vcmask 228352
    %120 = vst.msk [vmem:[#allocation7] sm:$0xff] %vm119, %v116
    // Predicated region
    $region18: #{tpu_custom_call.1} parent=1 // pred_check
      _
    $region19: #{tpu_custom_call.1} parent=1 // pred_check_branch
      %122 = sbr.rel (0) target = $region21
    $region20: #{tpu_custom_call.1} parent=1 // pred_region
      %s124 = ssub.s32 128, 128
      %125 = vsyncadd [#allocation4], %s124
      %s127 = sshll.u32 [#allocation7], 4
      %s128 = int_to_ptr.vmem [resolvable:$true] %s127
      %130 = dma.vmem_to_hbm [thread:$0]  %s128, 128, %s2, [#allocation4]
    $region21: #{tpu_custom_call.1} parent=1 // pred_fallthru
      _
    // Predicated region
    $region22: #{tpu_custom_call.1} parent=1 // pred_check
      _
    $region23: #{tpu_custom_call.1} parent=1 // pred_check_branch
      %132 = sbr.rel (0) target = $region25
    $region24: #{tpu_custom_call.1} parent=1 // pred_region
      %133 = dma.done [#allocation4], 128
    $region25: #{tpu_custom_call.1} parent=1 // pred_fallthru
      _
    %134 = vsyncpa [#allocation3], 1
    %135 = vsyncpa [#allocation6], 1
    %136 = vsyncpa [#allocation4], 1

</llo_original>
